<compile_context>
chip_gen: v6e
topology: v6e:2x2x1
jax: 0.10.0
libtpu: 0.0.40
codegen_flags: <defaults>
</compile_context>

<pallas_src>
import functools
import math

import jax
import jax.numpy as jnp
from jax.experimental import pallas as pl
from jax.experimental.pallas import tpu as pltpu

_NEG_BIG = -1e30          # finite stand-in for -inf (padded vocab cols / LSE init)
_MIB = 1024 * 1024


def _mlm_head_kernel(x_ref, w_ref, b_ref, out_ref, logits_ref, m_ref, l_ref, lse_ref):
    """Grid = (row tiles [parallel], nv compute steps + nw write steps [arbitrary])."""
    j = pl.program_id(1)
    nv, _, tv = logits_ref.shape          # number of vocab tiles, rows, tile width
    tw = out_ref.shape[1]                 # streamed output block width
    c = tw // tv                          # vocab tiles per output block (static)

    @pl.when(j == 0)
    def _init():
        m_ref[...] = jnp.full_like(m_ref, _NEG_BIG)
        l_ref[...] = jnp.zeros_like(l_ref)

    @pl.when(j < nv)
    def _compute():
        # (tm, D) @ (D, tv) on the MXU with f32 accumulation; bias added in f32.
        logits = jnp.dot(x_ref[...], w_ref[...],
                         preferred_element_type=jnp.float32) + b_ref[...]
        # Stage the raw logits for this vocab tile (dynamic index on the
        # leading scratch axis only — no dynamic lane/sublane slicing).
        logits_ref[j] = logits
        # Online log-sum-exp across vocab tiles.
        m_prev = m_ref[...]
        m_new = jnp.maximum(m_prev, jnp.max(logits, axis=-1, keepdims=True))
        l_ref[...] = (l_ref[...] * jnp.exp(m_prev - m_new)
                      + jnp.sum(jnp.exp(logits - m_new), axis=-1, keepdims=True))
        m_ref[...] = m_new

    @pl.when(j == nv - 1)
    def _finish_lse():
        lse_ref[...] = m_ref[...] + jnp.log(l_ref[...])

    @pl.when(j >= nv)
    def _write():
        # Write phase: normalize and stream lane-dense (tm, tw) output blocks.
        base = (j - nv) * c
        lse = lse_ref[...]
        for cc in range(c):               # small static unroll (tw <= 2048 lanes)
            out_ref[:, cc * tv:(cc + 1) * tv] = (
                logits_ref[base + cc] - lse).astype(out_ref.dtype)


def _pick_tv(vocab_size):
    if vocab_size <= 2048:
        return ((vocab_size + 127) // 128) * 128      # one tile, pad to 128
    for cand in (2048, 1024, 512, 256, 128):          # prefer no vocab padding
        if vocab_size % cand == 0:
            return cand
    return 1024


def prepare_mlm_params(weight, bias, *, tv=None, matmul_dtype=None):
    """Hoisted, call-invariant preprocessing of the head parameters.

    weight: (vocab_size, model_dim)  -- PyTorch nn.Linear layout
    bias:   (vocab_size,)
    Returns (w_t, b_row, vocab_size, tv): weight transposed / padded to (D, Vp)
    (optionally cast to matmul_dtype) and bias padded to (1, Vp) in f32.
    """
    V, D = weight.shape
    assert bias.shape == (V,)
    if tv is None:
        tv = _pick_tv(V)
    assert tv % 128 == 0
    v_pad = (-V) % tv
    w_t = weight.T                                    # (D, V): natural MXU layout
    b_row = bias.reshape(1, V).astype(jnp.float32)
    if v_pad:
        w_t = jnp.pad(w_t, ((0, 0), (0, v_pad)))
        b_row = jnp.pad(b_row, ((0, 0), (0, v_pad)), constant_values=_NEG_BIG)
    if matmul_dtype is not None:
        w_t = w_t.astype(matmul_dtype)
    return w_t, b_row, V, tv


def masked_lm_head_prepared(encoder_output, w_t, b_row, *, vocab_size, tv,
                            tm=None, matmul_dtype=None, interpret=False):
    """log_softmax(encoder_output @ W^T + b) with pre-laid-out (D, Vp) weights."""
    *lead, D = encoder_output.shape
    D_w, Vp = w_t.shape
    assert D == D_w and Vp % tv == 0 and b_row.shape == (1, Vp)
    nv = Vp // tv
    out_dtype = encoder_output.dtype

    x = encoder_output.reshape(-1, D)                 # fold batch/seq into M
    if matmul_dtype is not None:
        x = x.astype(matmul_dtype)
    N = x.shape[0]

    x_isz = jnp.dtype(x.dtype).itemsize
    w_isz = jnp.dtype(w_t.dtype).itemsize
    o_isz = jnp.dtype(out_dtype).itemsize

    # Output write tile: group c vocab tiles per streamed output block to
    # amortize per-grid-step overhead in the write phase.
    c = 1
    for d in range(1, nv + 1):
        if nv % d == 0 and d * tv <= 2048:
            c = d
    tw = c * tv
    nw = Vp // tw

    # Generation-aware VMEM budget (64 MiB v7x / 128 MiB v5e,v6e), with headroom.
    try:
        vmem_cap = int(pltpu.get_tpu_info().vmem_capacity_bytes)
    except Exception:
        vmem_cap = 64 * _MIB
    budget = max(vmem_cap - 16 * _MIB, 16 * _MIB)

    if tm is None:
        fixed = 2 * D * tv * w_isz + 2 * tv * 4
        per_row = Vp * 4 + 2 * D * x_isz + 2 * tw * o_isz + tv * 4 + 16
        tm = int(max(budget - fixed, _MIB) // per_row)
        tm_cap = ((N + 7) // 8) * 8
        tm = max(8, min(512, tm_cap, (tm // 8) * 8))
        # v7x megacore: give the "parallel" row axis >= 2 tiles when rows allow.
        if tm >= tm_cap and N >= 128:
            tm = max(8, ((tm_cap // 2 + 7) // 8) * 8)
    assert tm % 8 == 0

    n_pad = (-N) % tm
    if n_pad:
        x = jnp.pad(x, ((0, n_pad), (0, 0)))
    Np = N + n_pad

    est = (2 * tm * D * x_isz + 2 * D * tv * w_isz + 2 * tv * 4
           + 2 * tm * tw * o_isz + tm * Vp * 4 + 3 * tm * 4 + _MIB)
    vmem_limit = int(min(vmem_cap - 4 * _MIB, max(est * 1.3, 32 * _MIB)))

    cost = pl.CostEstimate(
        flops=int(2 * Np * D * Vp),
        transcendentals=int(Np * Vp),
        bytes_accessed=int(Np * D * x_isz + (Np // tm) * D * Vp * w_isz
                           + Vp * 4 + Np * Vp * o_isz))

    out = pl.pallas_call(
        _mlm_head_kernel,
        out_shape=jax.ShapeDtypeStruct((Np, Vp), out_dtype),
        grid=(Np // tm, nv + nw),
        in_specs=[
            # activations: resident per row tile
            pl.BlockSpec((tm, D), lambda i, j: (i, 0)),
            # streamed weight tiles (held at the last tile during the write phase
            # -> no extra DMA since the block index does not change)
            pl.BlockSpec((D, tv), lambda i, j: (0, jnp.minimum(j, nv - 1))),
            pl.BlockSpec((1, tv), lambda i, j: (0, jnp.minimum(j, nv - 1))),
        ],
        # streamed, lane-dense output blocks; index only advances in the write
        # phase, so each block is written exactly once (after the LSE is known).
        out_specs=pl.BlockSpec((tm, tw), lambda i, j: (i, jnp.maximum(j - nv, 0))),
        scratch_shapes=[
            pltpu.VMEM((nv, tm, tv), jnp.float32),    # staged raw logits (single copy)
            pltpu.VMEM((tm, 1), jnp.float32),         # running max
            pltpu.VMEM((tm, 1), jnp.float32),         # running sum(exp)
            pltpu.VMEM((tm, 1), jnp.float32),         # final log-sum-exp
        ],
        compiler_params=pltpu.CompilerParams(
            dimension_semantics=("parallel", "arbitrary"),
            vmem_limit_bytes=vmem_limit),
        cost_estimate=cost,
        interpret=interpret,
    )(x, w_t, b_row)

    if n_pad or Vp != vocab_size:
        out = out[:N, :vocab_size]
    return out.reshape(*lead, vocab_size)


def masked_lm_head(encoder_output, weight, bias, *, tm=None, tv=None,
                   matmul_dtype=None, interpret=False):
    """Convenience wrapper: log_softmax(encoder_output @ weight.T + bias, axis=-1).

    For repeated calls with static parameters, prefer prepare_mlm_params() once
    plus masked_lm_head_prepared() to avoid re-transposing/padding the weight.
    matmul_dtype=jnp.bfloat16 halves streamed weight bytes and uses the native
    bf16 MXU path on v6e/v7x (LSE math stays f32).
    """
    w_t, b_row, V, tv = prepare_mlm_params(weight, bias, tv=tv,
                                           matmul_dtype=matmul_dtype)
    return masked_lm_head_prepared(encoder_output, w_t, b_row, vocab_size=V,
                                   tv=tv, tm=tm, matmul_dtype=matmul_dtype,
                                   interpret=interpret)


def _reference(x, w, b):
    logits = jnp.einsum("...d,vd->...v", x, w,
                        precision=jax.lax.Precision.HIGHEST) + b
    return jax.nn.log_softmax(logits, axis=-1)


if __name__ == "__main__":
    key = jax.random.PRNGKey(0)
    ks = jax.random.split(key, 9)

    # Shapes implied by the module: (batch, seq, model_dim) -> vocab log-probs.
    batch, seq, model_dim, vocab = 2, 8, 128, 512
    x = jax.random.normal(ks[0], (batch, seq, model_dim), jnp.float32)
    w = jax.random.normal(ks[1], (vocab, model_dim), jnp.float32) / math.sqrt(model_dim)
    b = jax.random.normal(ks[2], (vocab,), jnp.float32) * 0.02

    # Test 1: prepared-parameter path (weight transpose/pad hoisted out of the
    # per-call path), no padding needed.
    w_t, b_row, V, tv = prepare_mlm_params(w, b)
    head = jax.jit(functools.partial(masked_lm_head_prepared, vocab_size=V, tv=tv))
    out = head(x, w_t, b_row)
    jax.block_until_ready(out)
    assert out.shape == (batch, seq, vocab)
    assert bool(jnp.all(jnp.isfinite(out)))
    err = float(jnp.max(jnp.abs(out - _reference(x, w, b))))
    assert err < 2e-3, f"mismatch vs reference: {err}"

    # Test 2: convenience path with padded rows and padded vocab (tv=128).
    b2_, s2_, d2_, v2_ = 3, 50, 128, 400
    x2 = jax.random.normal(ks[3], (b2_, s2_, d2_), jnp.float32)
    w2 = jax.random.normal(ks[4], (v2_, d2_), jnp.float32) / math.sqrt(d2_)
    bb2 = jax.random.normal(ks[5], (v2_,), jnp.float32) * 0.02
    out2 = jax.jit(functools.partial(masked_lm_head, tm=128, tv=128))(x2, w2, bb2)
    jax.block_until_ready(out2)
    assert out2.shape == (b2_, s2_, v2_)
    err2 = float(jnp.max(jnp.abs(out2 - _reference(x2, w2, bb2))))
    assert err2 < 2e-3, f"mismatch vs reference (padded path): {err2}"

    # Test 3: streamed vocab (nv=10) + default row tiling (>=2 row tiles).
    b3_, s3_, d3_, v3_ = 2, 80, 128, 1280
    x3 = jax.random.normal(ks[6], (b3_, s3_, d3_), jnp.float32)
    w3 = jax.random.normal(ks[7], (v3_, d3_), jnp.float32) / math.sqrt(d3_)
    bb3 = jax.random.normal(ks[8], (v3_,), jnp.float32) * 0.02
    out3 = jax.jit(functools.partial(masked_lm_head, tv=128))(x3, w3, bb3)
    jax.block_until_ready(out3)
    assert out3.shape == (b3_, s3_, v3_)
    err3 = float(jnp.max(jnp.abs(out3 - _reference(x3, w3, bb3))))
    assert err3 < 2e-3, f"mismatch vs reference (streamed vocab): {err3}"

    # Test 4: bf16 MXU-input fast path (looser tolerance; LSE stays f32).
    out4 = jax.jit(functools.partial(masked_lm_head,
                                     matmul_dtype=jnp.bfloat16))(x, w, b)
    jax.block_until_ready(out4)
    err4 = float(jnp.max(jnp.abs(out4 - _reference(x, w, b))))
    assert err4 < 1e-1, f"bf16 path mismatch vs f32 reference: {err4}"

    print("KERNEL_OK")
</pallas_src>

<mosaic_0001>
module attributes {stable_mosaic.version = 11 : i64} {
  func.func @_mlm_head_kernel(%arg0: i32, %arg1: i32, %arg2: memref<16x128xf32, #tpu.memory_space<vmem>>, %arg3: memref<128x512xf32, #tpu.memory_space<vmem>>, %arg4: memref<1x512xf32, #tpu.memory_space<vmem>>, %arg5: memref<16x512xf32, #tpu.memory_space<vmem>>, %arg6: memref<1x16x512xf32, #tpu.memory_space<vmem>>, %arg7: memref<16x1xf32, #tpu.memory_space<vmem>>, %arg8: memref<16x1xf32, #tpu.memory_space<vmem>>, %arg9: memref<16x1xf32, #tpu.memory_space<vmem>>) attributes {dimension_semantics = [#tpu.dimension_semantics<parallel>, #tpu.dimension_semantics<arbitrary>], iteration_bounds = array<i64: 1, 2>, scalar_prefetch = 0 : i64, scratch_operands = 4 : i64, tpu.core_type = #tpu.core_type<tc>, window_params = [{transform_indices = @transform_0, window_bounds = array<i64: 16, 128>}, {transform_indices = @transform_1, window_bounds = array<i64: 128, 512>}, {transform_indices = @transform_2, window_bounds = array<i64: 1, 512>}, {transform_indices = @transform_3, window_bounds = array<i64: 16, 512>}]} {
    %c0_i32 = arith.constant 0 : i32
    %0 = arith.cmpi eq, %arg1, %c0_i32 : i32
    %1 = arith.extui %0 : i1 to i32
    %c0_i32_0 = arith.constant 0 : i32
    %2 = arith.cmpi ne, %1, %c0_i32_0 : i32
    scf.if %2 {
      %cst = arith.constant -1.000000e+30 : f32
      %12 = vector.broadcast %cst : f32 to vector<16x1xf32>
      %c0 = arith.constant 0 : index
      %c0_6 = arith.constant 0 : index
      %13 = vector.load %arg7[%c0, %c0_6] : memref<16x1xf32, #tpu.memory_space<vmem>>, vector<16x1xf32>
      tpu.vector_store %arg7[%c0, %c0_6], %12 {strides = array<i32>} : memref<16x1xf32, #tpu.memory_space<vmem>>, vector<16x1xf32>,
      %cst_7 = arith.constant 0.000000e+00 : f32
      %14 = vector.broadcast %cst_7 : f32 to vector<16x1xf32>
      %c0_8 = arith.constant 0 : index
      %c0_9 = arith.constant 0 : index
      %15 = vector.load %arg8[%c0_8, %c0_9] : memref<16x1xf32, #tpu.memory_space<vmem>>, vector<16x1xf32>
      tpu.vector_store %arg8[%c0_8, %c0_9], %14 {strides = array<i32>} : memref<16x1xf32, #tpu.memory_space<vmem>>, vector<16x1xf32>,
    } else {
    }
    %c1_i32 = arith.constant 1 : i32
    %3 = arith.cmpi slt, %arg1, %c1_i32 : i32
    %4 = arith.extui %3 : i1 to i32
    %c0_i32_1 = arith.constant 0 : i32
    %5 = arith.cmpi ne, %4, %c0_i32_1 : i32
    scf.if %5 {
      %c0 = arith.constant 0 : index
      %c0_6 = arith.constant 0 : index
      %12 = vector.load %arg2[%c0, %c0_6] : memref<16x128xf32, #tpu.memory_space<vmem>>, vector<16x128xf32>
      %c0_7 = arith.constant 0 : index
      %c0_8 = arith.constant 0 : index
      %13 = vector.load %arg3[%c0_7, %c0_8] : memref<128x512xf32, #tpu.memory_space<vmem>>, vector<128x512xf32>
      %cst = arith.constant dense<0.000000e+00> : vector<16x512xf32>
      %14 = tpu.matmul %12, %13, %cst {dimension_numbers = #tpu.dot_dimension_numbers<[1], [0], [0], [1], [0, 0, 1, 1], [], []>} : vector<16x128xf32>, vector<128x512xf32>, vector<16x512xf32> -> vector<16x512xf32>
      %c0_9 = arith.constant 0 : index
      %c0_10 = arith.constant 0 : index
      %15 = vector.load %arg4[%c0_9, %c0_10] : memref<1x512xf32, #tpu.memory_space<vmem>>, vector<1x512xf32>
      %16 = vector.broadcast %15 : vector<1x512xf32> to vector<16x512xf32>
      %17 = arith.addf %14, %16 : vector<16x512xf32>
      %18 = arith.index_cast %arg1 : i32 to index
      %c0_11 = arith.constant 0 : index
      %c0_12 = arith.constant 0 : index
      %19 = vector.load %arg6[%18, %c0_11, %c0_12] : memref<1x16x512xf32, #tpu.memory_space<vmem>>, vector<1x16x512xf32>
      %20 = vector.shape_cast %19 : vector<1x16x512xf32> to vector<16x512xf32>
      %21 = vector.shape_cast %17 : vector<16x512xf32> to vector<1x16x512xf32>
      tpu.vector_store %arg6[%18, %c0_11, %c0_12], %21 {strides = array<i32>} : memref<1x16x512xf32, #tpu.memory_space<vmem>>, vector<1x16x512xf32>,
      %c0_13 = arith.constant 0 : index
      %c0_14 = arith.constant 0 : index
      %22 = vector.load %arg7[%c0_13, %c0_14] : memref<16x1xf32, #tpu.memory_space<vmem>>, vector<16x1xf32>
      %cst_15 = arith.constant dense<0xFF800000> : vector<16xf32>
      %23 = vector.multi_reduction <maximumf>, %17, %cst_15 [1] : vector<16x512xf32> to vector<16xf32>
      %24 = vector.shape_cast %23 : vector<16xf32> to vector<16x1xf32>
      %25 = arith.maximumf %22, %24 : vector<16x1xf32>
      %c0_16 = arith.constant 0 : index
      %c0_17 = arith.constant 0 : index
      %26 = vector.load %arg8[%c0_16, %c0_17] : memref<16x1xf32, #tpu.memory_space<vmem>>, vector<16x1xf32>
      %27 = arith.subf %22, %25 : vector<16x1xf32>
      %28 = math.exp %27 : vector<16x1xf32>
      %29 = arith.mulf %26, %28 : vector<16x1xf32>
      %30 = vector.broadcast %25 : vector<16x1xf32> to vector<16x512xf32>
      %31 = arith.subf %17, %30 : vector<16x512xf32>
      %32 = math.exp %31 : vector<16x512xf32>
      %cst_18 = arith.constant dense<0.000000e+00> : vector<16xf32>
      %33 = vector.multi_reduction <add>, %32, %cst_18 [1] : vector<16x512xf32> to vector<16xf32>
      %34 = vector.shape_cast %33 : vector<16xf32> to vector<16x1xf32>
      %35 = arith.addf %29, %34 : vector<16x1xf32>
      %c0_19 = arith.constant 0 : index
      %c0_20 = arith.constant 0 : index
      %36 = vector.load %arg8[%c0_19, %c0_20] : memref<16x1xf32, #tpu.memory_space<vmem>>, vector<16x1xf32>
      tpu.vector_store %arg8[%c0_19, %c0_20], %35 {strides = array<i32>} : memref<16x1xf32, #tpu.memory_space<vmem>>, vector<16x1xf32>,
      %c0_21 = arith.constant 0 : index
      %c0_22 = arith.constant 0 : index
      %37 = vector.load %arg7[%c0_21, %c0_22] : memref<16x1xf32, #tpu.memory_space<vmem>>, vector<16x1xf32>
      tpu.vector_store %arg7[%c0_21, %c0_22], %25 {strides = array<i32>} : memref<16x1xf32, #tpu.memory_space<vmem>>, vector<16x1xf32>,
    } else {
    }
    %c0_i32_2 = arith.constant 0 : i32
    %6 = arith.cmpi eq, %arg1, %c0_i32_2 : i32
    %7 = arith.extui %6 : i1 to i32
    %c0_i32_3 = arith.constant 0 : i32
    %8 = arith.cmpi ne, %7, %c0_i32_3 : i32
    scf.if %8 {
      %c0 = arith.constant 0 : index
      %c0_6 = arith.constant 0 : index
      %12 = vector.load %arg7[%c0, %c0_6] : memref<16x1xf32, #tpu.memory_space<vmem>>, vector<16x1xf32>
      %c0_7 = arith.constant 0 : index
      %c0_8 = arith.constant 0 : index
      %13 = vector.load %arg8[%c0_7, %c0_8] : memref<16x1xf32, #tpu.memory_space<vmem>>, vector<16x1xf32>
      %14 = math.log %13 : vector<16x1xf32>
      %15 = arith.addf %12, %14 : vector<16x1xf32>
      %c0_9 = arith.constant 0 : index
      %c0_10 = arith.constant 0 : index
      %16 = vector.load %arg9[%c0_9, %c0_10] : memref<16x1xf32, #tpu.memory_space<vmem>>, vector<16x1xf32>
      tpu.vector_store %arg9[%c0_9, %c0_10], %15 {strides = array<i32>} : memref<16x1xf32, #tpu.memory_space<vmem>>, vector<16x1xf32>,
    } else {
    }
    %c1_i32_4 = arith.constant 1 : i32
    %9 = arith.cmpi sge, %arg1, %c1_i32_4 : i32
    %10 = arith.extui %9 : i1 to i32
    %c0_i32_5 = arith.constant 0 : i32
    %11 = arith.cmpi ne, %10, %c0_i32_5 : i32
    scf.if %11 {
      %c1_i32_6 = arith.constant 1 : i32
      %12 = arith.subi %arg1, %c1_i32_6 : i32
      %c1_i32_7 = arith.constant 1 : i32
      %13 = arith.muli %12, %c1_i32_7 : i32
      %c0 = arith.constant 0 : index
      %c0_8 = arith.constant 0 : index
      %14 = vector.load %arg9[%c0, %c0_8] : memref<16x1xf32, #tpu.memory_space<vmem>>, vector<16x1xf32>
      %c0_i32_9 = arith.constant 0 : i32
      %15 = arith.addi %13, %c0_i32_9 : i32
      %16 = arith.index_cast %15 : i32 to index
      %c0_10 = arith.constant 0 : index
      %c0_11 = arith.constant 0 : index
      %17 = vector.load %arg6[%16, %c0_10, %c0_11] : memref<1x16x512xf32, #tpu.memory_space<vmem>>, vector<1x16x512xf32>
      %18 = vector.shape_cast %17 : vector<1x16x512xf32> to vector<16x512xf32>
      %19 = vector.broadcast %14 : vector<16x1xf32> to vector<16x512xf32>
      %20 = arith.subf %18, %19 : vector<16x512xf32>
      %c0_12 = arith.constant 0 : index
      %c0_13 = arith.constant 0 : index
      %21 = vector.load %arg5[%c0_12, %c0_13] : memref<16x512xf32, #tpu.memory_space<vmem>>, vector<16x512xf32>
      tpu.vector_store %arg5[%c0_12, %c0_13], %20 {strides = array<i32>} : memref<16x512xf32, #tpu.memory_space<vmem>>, vector<16x512xf32>,
    } else {
    }
    return
  }
  func.func @transform_0(%arg0: i32, %arg1: i32) -> (i32, i32) {
    %c0_i32 = arith.constant 0 : i32
    %c0_i32_0 = arith.constant 0 : i32
    return %arg0, %c0_i32 : i32, i32
  }
  func.func @transform_1(%arg0: i32, %arg1: i32) -> (i32, i32) {
    %c0_i32 = arith.constant 0 : i32
    %0 = arith.minsi %arg1, %c0_i32 : i32
    %c0_i32_0 = arith.constant 0 : i32
    %c0_i32_1 = arith.constant 0 : i32
    return %c0_i32_0, %0 : i32, i32
  }
  func.func @transform_2(%arg0: i32, %arg1: i32) -> (i32, i32) {
    %c0_i32 = arith.constant 0 : i32
    %0 = arith.minsi %arg1, %c0_i32 : i32
    %c0_i32_0 = arith.constant 0 : i32
    %c0_i32_1 = arith.constant 0 : i32
    return %c0_i32_0, %0 : i32, i32
  }
  func.func @transform_3(%arg0: i32, %arg1: i32) -> (i32, i32) {
    %c1_i32 = arith.constant 1 : i32
    %0 = arith.subi %arg1, %c1_i32 : i32
    %c0_i32 = arith.constant 0 : i32
    %1 = arith.maxsi %0, %c0_i32 : i32
    %c0_i32_0 = arith.constant 0 : i32
    return %arg0, %1 : i32, i32
  }
}

</mosaic_0001>

<llo_original>
// kernel: masked_lm_head_prepared.1
$region0: #{masked_lm_head_prepared.1}
  #allocation0 [shape = 'u32[]', space=smem, size = 0x4, offset = 0x4, fixed_abs, tag = 'smem constant byte address 0x4 - core index']
  #allocation1 [shape = 'u32[144,128]{1,0:T(1,128)}', space=vmem, size = 0x12000, scoped, tag = 'internal scratch']
  #allocation2 [shape = 'f32[1,16,512]{2,1,0:T(8,128)}', space=vmem, size = 0x8000, scoped, tag = 'scratch operand']
  #allocation3 [shape = 'f32[16,1]{1,0:T(8,128)}', space=vmem, size = 0x2000, scoped, tag = 'scratch operand']
  #allocation4 [shape = 'f32[16,1]{1,0:T(8,128)}', space=vmem, size = 0x2000, scoped, tag = 'scratch operand']
  #allocation5 [shape = 'f32[16,1]{1,0:T(8,128)}', space=vmem, size = 0x2000, scoped, tag = 'scratch operand']
  %s0 = inlined_call_operand.hbm [shape: f32[16,128], index: 0, kind: input, shape index: {}]
  %s1 = inlined_call_operand.hbm [shape: f32[128,512], index: 1, kind: input, shape index: {}]
  %s2 = inlined_call_operand.vmem [shape: f32[1,512], index: 2, kind: input, shape index: {}]
  %s3 = inlined_call_operand.hbm [shape: f32[16,512], index: 3, kind: output, shape index: {}]
  %s4 = sld [smem:[#allocation0]]
  $region69: #{masked_lm_head_prepared.1} parent=0
    _
  %s6 = ssub.s32 1, %s4
  %s7 = scalar_select 0, %s6, %s4
  $region1: #{masked_lm_head_prepared.1} parent=0
    #allocation6 [shape = 'u8[8192]{0}', space=vmem, size = 0x2000, scoped, tag = 'input window, operand 0, single buffered']
    #allocation7 [shape = 's32[2]{0}', space=sflag, size = 0x8, scoped, tag = 'scoped memory for masked_lm_head_prepared.1']
    #allocation8 [shape = 's32[2]{0}', space=sflag, size = 0x8, scoped, tag = 'scoped memory for masked_lm_head_prepared.1']
    #allocation9 [shape = 'u8[524288]{0}', space=vmem, size = 0x80000, scoped, tag = 'input window, operand 1']
    #allocation10 [shape = 's32[2]{0}', space=sflag, size = 0x8, scoped, tag = 'scoped memory for masked_lm_head_prepared.1']
    #allocation11 [shape = 'u8[65536]{0}', space=vmem, size = 0x10000, scoped, tag = 'output window, operand 0']
    %8 = vsyncpa [#allocation7], 0
    %9 = vsyncpa [#allocation10], 0
    %s10 = scalar_lea.sflag [#allocation10], 1
    %11 = vsyncpa %s10, 0
    %12 = vsyncpa [#allocation8], 0
    %s13 = scalar_lea.sflag [#allocation8], 1
    %14 = vsyncpa %s13, 0
    loop: start=0, step=1, limit=4
    $region2: #{masked_lm_head_prepared.1} parent=1 // loop_pre_header
      _
    $region3: #{masked_lm_head_prepared.1} parent=1 // loop_header
      %s16 = sphi 0, %s20
      %p17 = scmp.ge.s32.totalorder %s16, 4
      %s23 = sphi 0, %s35
      %s24 = sphi 0, %s31
      %s25 = sphi 0, %s23
      %s26 = sphi 0, %s24
      %s27 = sphi 0, %s25
      %s28 = sphi 0, %s26
      %s38 = sphi 0, %s40
      %s41 = sphi 0, %s38
      %s42 = sphi 0, %s41
      %s58 = sphi 0, %s42
      %s68 = sphi 0, %s70
      %s71 = sphi 0, %s68
      %s72 = sphi 0, %s71
      %s88 = sphi 0, %s72
      %s98 = sphi 0, %s100
      %s101 = sphi 0, %s98
      %s102 = sphi 0, %s101
      %s118 = sphi 0, %s102
      %s132 = sphi 0, %s134
      %s135 = sphi 0, %s132
      %s136 = sphi 0, %s135
      %s152 = sphi 0, %s136
    $region4: #{masked_lm_head_prepared.1} parent=1 // loop_header_branch
      %19 = sbr.rel (%p17) target = $region8
    $region5: #{masked_lm_head_prepared.1} parent=1 // loop_body
      %s21 = ssub.s32 %s16, 1
      %s22 = ssub.s32 %s16, 2
      %s29 = sadd.s32 1, %s24
      %p30 = scmp.ge.s32.totalorder %s29, 2
      %s31 = scalar_select %p30, 0, %s29
      %s32 = sadd.s32 1, %s23
      %s33 = scalar_select %p30, %s32, %s23
      %p34 = scmp.ge.s32.totalorder %s33, 1
      %s35 = scalar_select %p34, 0, %s33
      %s36 = ssub.s32 %s23, %s35
      %p37 = scmp.eq.s32.totalorder %s36, 0
      %s39 = sadd.s32 %s38, 1
      %s40 = scalar_select %p37, %s38, %s39
      %p43 = pneg %p37
      %p44 = scmp.eq.s32.totalorder %s16, 1
      %p45 = por %p43, %p44
      %p46 = scmp.ne.s32.totalorder %s38, %s41
      %p47 = scmp.eq.s32.totalorder %s16, 0
      %p48 = por %p46, %p47
      %p49 = scmp.ne.s32.totalorder %s38, %s41
      %p50 = scmp.eq.s32.totalorder %s21, 1
      %p51 = por %p49, %p50
      %p52 = scmp.ne.s32.totalorder %s41, %s42
      %p53 = scmp.eq.s32.totalorder %s21, 0
      %p54 = por %p52, %p53
      %p55 = scmp.ne.s32.totalorder %s41, %s42
      %p56 = scmp.eq.s32.totalorder %s22, 1
      %p57 = por %p55, %p56
      %p59 = scmp.ne.s32.totalorder %s42, %s58
      %p60 = scmp.eq.s32.totalorder %s22, 0
      %p61 = por %p59, %p60
      %p62 = scmp.lt.s32.totalorder %s24, 0
      %s63 = scalar_select %p62, %s24, 0
      %p64 = scmp.lt.s32.totalorder %s31, 0
      %s65 = scalar_select %p64, %s31, 0
      %s66 = ssub.s32 %s63, %s65
      %p67 = scmp.eq.s32.totalorder %s66, 0
      %s69 = sadd.s32 %s68, 1
      %s70 = scalar_select %p67, %s68, %s69
      %p73 = pneg %p67
      %p74 = scmp.eq.s32.totalorder %s16, 1
      %p75 = por %p73, %p74
      %p76 = scmp.ne.s32.totalorder %s68, %s71
      %p77 = scmp.eq.s32.totalorder %s16, 0
      %p78 = por %p76, %p77
      %p79 = scmp.ne.s32.totalorder %s68, %s71
      %p80 = scmp.eq.s32.totalorder %s21, 1
      %p81 = por %p79, %p80
      %p82 = scmp.ne.s32.totalorder %s71, %s72
      %p83 = scmp.eq.s32.totalorder %s21, 0
      %p84 = por %p82, %p83
      %p85 = scmp.ne.s32.totalorder %s71, %s72
      %p86 = scmp.eq.s32.totalorder %s22, 1
      %p87 = por %p85, %p86
      %p89 = scmp.ne.s32.totalorder %s72, %s88
      %p90 = scmp.eq.s32.totalorder %s22, 0
      %p91 = por %p89, %p90
      %p92 = scmp.lt.s32.totalorder %s24, 0
      %s93 = scalar_select %p92, %s24, 0
      %p94 = scmp.lt.s32.totalorder %s31, 0
      %s95 = scalar_select %p94, %s31, 0
      %s96 = ssub.s32 %s93, %s95
      %p97 = scmp.eq.s32.totalorder %s96, 0
      %s99 = sadd.s32 %s98, 1
      %s100 = scalar_select %p97, %s98, %s99
      %p103 = pneg %p97
      %p104 = scmp.eq.s32.totalorder %s16, 1
      %p105 = por %p103, %p104
      %p106 = scmp.ne.s32.totalorder %s98, %s101
      %p107 = scmp.eq.s32.totalorder %s16, 0
      %p108 = por %p106, %p107
      %p109 = scmp.ne.s32.totalorder %s98, %s101
      %p110 = scmp.eq.s32.totalorder %s21, 1
      %p111 = por %p109, %p110
      %p112 = scmp.ne.s32.totalorder %s101, %s102
      %p113 = scmp.eq.s32.totalorder %s21, 0
      %p114 = por %p112, %p113
      %p115 = scmp.ne.s32.totalorder %s101, %s102
      %p116 = scmp.eq.s32.totalorder %s22, 1
      %p117 = por %p115, %p116
      %p119 = scmp.ne.s32.totalorder %s102, %s118
      %p120 = scmp.eq.s32.totalorder %s22, 0
      %p121 = por %p119, %p120
      %s122 = ssub.s32 %s24, 1
      %p123 = scmp.gt.s32.totalorder %s122, 0
      %s124 = scalar_select %p123, %s122, 0
      %s125 = ssub.s32 %s31, 1
      %p126 = scmp.gt.s32.totalorder %s125, 0
      %s127 = scalar_select %p126, %s125, 0
      %s128 = ssub.s32 %s23, %s35
      %s129 = ssub.s32 %s124, %s127
      %s130 = sor.u32 %s128, %s129
      %p131 = scmp.eq.s32.totalorder %s130, 0
      %s133 = sadd.s32 %s132, 1
      %s134 = scalar_select %p131, %s132, %s133
      %p137 = pneg %p131
      %p138 = scmp.eq.s32.totalorder %s16, 1
      %p139 = por %p137, %p138
      %p140 = scmp.ne.s32.totalorder %s132, %s135
      %p141 = scmp.eq.s32.totalorder %s16, 0
      %p142 = por %p140, %p141
      %p143 = scmp.ne.s32.totalorder %s132, %s135
      %p144 = scmp.eq.s32.totalorder %s21, 1
      %p145 = por %p143, %p144
      %p146 = scmp.ne.s32.totalorder %s135, %s136
      %p147 = scmp.eq.s32.totalorder %s21, 0
      %p148 = por %p146, %p147
      %p149 = scmp.ne.s32.totalorder %s135, %s136
      %p150 = scmp.eq.s32.totalorder %s22, 1
      %p151 = por %p149, %p150
      %p153 = scmp.ne.s32.totalorder %s136, %s152
      %p154 = scmp.eq.s32.totalorder %s22, 0
      %p155 = por %p153, %p154
      %p156 = scmp.le.s32.totalorder 1, %s16
      %p157 = scmp.lt.s32.totalorder %s16, 3
      %p158 = pnand %p156, %p157
      %p159 = pneg %p158
      // Predicated region
      $region9: #{masked_lm_head_prepared.1} parent=5 // pred_check
        _
      $region10: #{masked_lm_head_prepared.1} parent=5 // pred_check_branch
        %161 = sbr.rel (%p158) target = $region12
      $region11: #{masked_lm_head_prepared.1} parent=5 // pred_region
        %s162 = ssub.s32 %s16, 1
        // Predicated region
        $region13: #{masked_lm_head_prepared.1} parent=11 // pred_check
          %p163 = pneg %p54
        $region14: #{masked_lm_head_prepared.1} parent=11 // pred_check_branch
          %165 = sbr.rel (%p163) target = $region16
        $region15: #{masked_lm_head_prepared.1} parent=11 // pred_region
          %s166 = smul.u32 2, %s25
          %s168 = ssub.s32 256, 256
          %169 = vsyncadd [#allocation7], %s168
          %s170 = smul.addr %s166, 128
          %s171 = scalar_lea.hbm %s0, %s170
          %s172 = sshll.u32 [#allocation6], 4
          %s173 = int_to_ptr.vmem [resolvable:$true] %s172
          %178 = dma.hbm_to_vmem [thread:$0]  %s171, 256, %s173, [#allocation7], 128, 128, 8
        $region16: #{masked_lm_head_prepared.1} parent=11 // pred_fallthru
          _
      $region12: #{masked_lm_head_prepared.1} parent=5 // pred_fallthru
        _
      %p179 = scmp.lt.s32.totalorder %s16, 2
      // Predicated region
      $region17: #{masked_lm_head_prepared.1} parent=5 // pred_check
        %p180 = pneg %p179
      $region18: #{masked_lm_head_prepared.1} parent=5 // pred_check_branch
        %182 = sbr.rel (%p180) target = $region20
      $region19: #{masked_lm_head_prepared.1} parent=5 // pred_region
        // Predicated region
        $region21: #{masked_lm_head_prepared.1} parent=19 // pred_check
          %p183 = pneg %p78
        $region22: #{masked_lm_head_prepared.1} parent=19 // pred_check_branch
          %185 = sbr.rel (%p183) target = $region24
        $region23: #{masked_lm_head_prepared.1} parent=19 // pred_region
          %s186 = sand.u32 %s68, 1
          %s187 = scalar_lea.sflag [#allocation10], %s186
          %s188 = sand.u32 %s68, 1
          %s189 = smul.addr %s188, 512
          %s190 = scalar_lea.vmem [#allocation9], %s189
          %p191 = scmp.lt.s32.totalorder %s24, 0
          %s192 = scalar_select %p191, %s24, 0
          %s193 = smul.u32 4, %s192
          %s195 = ssub.s32 8192, 8192
          %196 = vsyncadd %s187, %s195
          %s197 = smul.addr %s193, 128
          %s198 = scalar_lea.hbm %s1, %s197
          %s199 = sshll.u32 %s190, 4
          %s200 = int_to_ptr.vmem [resolvable:$true] %s199
          %205 = dma.hbm_to_vmem [thread:$0]  %s198, 8192, %s200, %s187, 512, 512, 32
        $region24: #{masked_lm_head_prepared.1} parent=19 // pred_fallthru
          _
        // Predicated region
        $region25: #{masked_lm_head_prepared.1} parent=19 // pred_check
          %p206 = pneg %p108
        $region26: #{masked_lm_head_prepared.1} parent=19 // pred_check_branch
          %208 = sbr.rel (%p206) target = $region28
        $region27: #{masked_lm_head_prepared.1} parent=19 // pred_region
          %p209 = scmp.lt.s32.totalorder %s24, 0
          %s210 = scalar_select %p209, %s24, 0
          %s211 = smul.u32 4, %s210
          %p212 = scmp.lt.s32.totalorder %s211, 3
          %s213 = scalar_select %p212, %s211, 3
          %s214 = scalar_lea.vmem %s2, %s213
          %p215 = scmp.lt.s32.totalorder %s24, 0
          %s216 = scalar_select %p215, %s24, 0
          %s217 = smul.u32 4, %s216
        $region28: #{masked_lm_head_prepared.1} parent=19 // pred_fallthru
          _
      $region20: #{masked_lm_head_prepared.1} parent=5 // pred_fallthru
        _
      %p218 = scmp.le.s32.totalorder 1, %s16
      %p219 = scmp.lt.s32.totalorder %s16, 3
      %p220 = pnand %p218, %p219
      %p221 = pneg %p220
      // Predicated region
      $region29: #{masked_lm_head_prepared.1} parent=5 // pred_check
        _
      $region30: #{masked_lm_head_prepared.1} parent=5 // pred_check_branch
        %223 = sbr.rel (%p220) target = $region32
      $region31: #{masked_lm_head_prepared.1} parent=5 // pred_region
        %s224 = ssub.s32 %s16, 1
        // Predicated region
        $region33: #{masked_lm_head_prepared.1} parent=31 // pred_check
          %p225 = pneg %p54
        $region34: #{masked_lm_head_prepared.1} parent=31 // pred_check_branch
          %227 = sbr.rel (%p225) target = $region36
        $region35: #{masked_lm_head_prepared.1} parent=31 // pred_region
          %228 = dma.done [#allocation7], 256
        $region36: #{masked_lm_head_prepared.1} parent=31 // pred_fallthru
          _
        %s229 = sand.u32 %s71, 1
        %s230 = scalar_lea.sflag [#allocation10], %s229
        %s231 = sand.u32 %s71, 1
        %s232 = smul.addr %s231, 512
        %s233 = scalar_lea.vmem [#allocation9], %s232
        // Predicated region
        $region37: #{masked_lm_head_prepared.1} parent=31 // pred_check
          %p234 = pneg %p84
        $region38: #{masked_lm_head_prepared.1} parent=31 // pred_check_branch
          %236 = sbr.rel (%p234) target = $region40
        $region39: #{masked_lm_head_prepared.1} parent=31 // pred_region
          %237 = dma.done %s230, 8192
        $region40: #{masked_lm_head_prepared.1} parent=31 // pred_fallthru
          _
        %p238 = pneg %p54
        %p239 = pneg %p51
        %s240 = sand.u32 %s71, 1
        %s241 = scalar_lea.sflag [#allocation10], %s240
        %s242 = sand.u32 %s71, 1
        %s243 = smul.addr %s242, 512
        %s244 = scalar_lea.vmem [#allocation9], %s243
        %p245 = pneg %p84
        %p246 = pneg %p81
        %p247 = scmp.lt.s32.totalorder %s26, 0
        %s248 = scalar_select %p247, %s26, 0
        %s249 = smul.u32 4, %s248
        %p250 = scmp.lt.s32.totalorder %s249, 3
        %s251 = scalar_select %p250, %s249, 3
        %s252 = scalar_lea.vmem %s2, %s251
        %p253 = pneg %p114
        %p254 = pneg %p111
        %p255 = pneg %p148
        %p256 = pneg %p145
        %s257 = sand.u32 %s135, 1
        %s258 = scalar_lea.sflag [#allocation8], %s257
        %s259 = sand.u32 %s135, 1
        %s260 = smul.addr %s259, 64
        %s261 = scalar_lea.vmem [#allocation11], %s260
        %s262 = smul.u32 2, %s25
        %p263 = scmp.lt.s32.totalorder %s26, 0
        %s264 = scalar_select %p263, %s26, 0
        %s265 = smul.u32 4, %s264
        %p266 = scmp.lt.s32.totalorder %s26, 0
        %s267 = scalar_select %p266, %s26, 0
        %s268 = smul.u32 4, %s267
        %p269 = scmp.lt.s32.totalorder %s268, 3
        %s270 = scalar_select %p269, %s268, 3
        %s271 = scalar_lea.vmem %s2, %s270
        %p272 = scmp.lt.s32.totalorder %s26, 0
        %s273 = scalar_select %p272, %s26, 0
        %s274 = smul.u32 4, %s273
        %s275 = ssub.s32 %s26, 1
        %p276 = scmp.gt.s32.totalorder %s275, 0
        %s277 = scalar_select %p276, %s275, 0
        %s278 = smul.u32 2, %s25
        %s279 = smul.u32 4, %s277
        %p280 = scmp.eq.s32.totalorder %s26, 0
        // Predicated region
        $region41: #{masked_lm_head_prepared.1} parent=31 // pred_check
          %p281 = pneg %p280
        $region42: #{masked_lm_head_prepared.1} parent=31 // pred_check_branch
          %283 = sbr.rel (%p281) target = $region44
        $region43: #{masked_lm_head_prepared.1} parent=31 // pred_region
          %vm284 = vcmask 7168
          %285 = vst.msk [vmem:[#allocation3] sm:$0xff] %vm284, -1e+30
          %286 = vst.msk [vmem:[#allocation3 + $0x8] sm:$0xff] %vm284, -1e+30
          %287 = vst.msk [vmem:[#allocation4] sm:$0xff] %vm284, 0.0
          %288 = vst.msk [vmem:[#allocation4 + $0x8] sm:$0xff] %vm284, 0.0
        $region44: #{masked_lm_head_prepared.1} parent=31 // pred_fallthru
          _
        %p289 = scmp.lt.s32.totalorder %s26, 1
        // Predicated region
        $region45: #{masked_lm_head_prepared.1} parent=31 // pred_check
          %p290 = pneg %p289
        $region46: #{masked_lm_head_prepared.1} parent=31 // pred_check_branch
          %292 = sbr.rel (%p290) target = $region48
        $region47: #{masked_lm_head_prepared.1} parent=31 // pred_region
          %v293 = vld [vmem:[#allocation6] sm:$0xff]
          %v294 = vld [vmem:[#allocation6 + $0x8] sm:$0xff]
          %v295 = vld [vmem:[%s233] sm:$0xff]
          %v296 = vld [vmem:[%s233 + $0x8] sm:$0xff]
          %v297 = vld [vmem:[%s233 + $0x10] sm:$0xff]
          %v298 = vld [vmem:[%s233 + $0x18] sm:$0xff]
          %v299 = vld [vmem:[%s233 + $0x20] sm:$0xff]
          %v300 = vld [vmem:[%s233 + $0x28] sm:$0xff]
          %v301 = vld [vmem:[%s233 + $0x30] sm:$0xff]
          %v302 = vld [vmem:[%s233 + $0x38] sm:$0xff]
          %v303 = vld [vmem:[%s233 + $0x40] sm:$0xff]
          %v304 = vld [vmem:[%s233 + $0x48] sm:$0xff]
          %v305 = vld [vmem:[%s233 + $0x50] sm:$0xff]
          %v306 = vld [vmem:[%s233 + $0x58] sm:$0xff]
          %v307 = vld [vmem:[%s233 + $0x60] sm:$0xff]
          %v308 = vld [vmem:[%s233 + $0x68] sm:$0xff]
          %v309 = vld [vmem:[%s233 + $0x70] sm:$0xff]
          %v310 = vld [vmem:[%s233 + $0x78] sm:$0xff]
          %v311 = vld [vmem:[%s233 + $0x80] sm:$0xff]
          %v312 = vld [vmem:[%s233 + $0x88] sm:$0xff]
          %v313 = vld [vmem:[%s233 + $0x90] sm:$0xff]
          %v314 = vld [vmem:[%s233 + $0x98] sm:$0xff]
          %v315 = vld [vmem:[%s233 + $0xa0] sm:$0xff]
          %v316 = vld [vmem:[%s233 + $0xa8] sm:$0xff]
          %v317 = vld [vmem:[%s233 + $0xb0] sm:$0xff]
          %v318 = vld [vmem:[%s233 + $0xb8] sm:$0xff]
          %v319 = vld [vmem:[%s233 + $0xc0] sm:$0xff]
          %v320 = vld [vmem:[%s233 + $0xc8] sm:$0xff]
          %v321 = vld [vmem:[%s233 + $0xd0] sm:$0xff]
          %v322 = vld [vmem:[%s233 + $0xd8] sm:$0xff]
          %v323 = vld [vmem:[%s233 + $0xe0] sm:$0xff]
          %v324 = vld [vmem:[%s233 + $0xe8] sm:$0xff]
          %v325 = vld [vmem:[%s233 + $0xf0] sm:$0xff]
          %v326 = vld [vmem:[%s233 + $0xf8] sm:$0xff]
          %v327 = vld [vmem:[%s233 + $0x100] sm:$0xff]
          %v328 = vld [vmem:[%s233 + $0x108] sm:$0xff]
          %v329 = vld [vmem:[%s233 + $0x110] sm:$0xff]
          %v330 = vld [vmem:[%s233 + $0x118] sm:$0xff]
          %v331 = vld [vmem:[%s233 + $0x120] sm:$0xff]
          %v332 = vld [vmem:[%s233 + $0x128] sm:$0xff]
          %v333 = vld [vmem:[%s233 + $0x130] sm:$0xff]
          %v334 = vld [vmem:[%s233 + $0x138] sm:$0xff]
          %v335 = vld [vmem:[%s233 + $0x140] sm:$0xff]
          %v336 = vld [vmem:[%s233 + $0x148] sm:$0xff]
          %v337 = vld [vmem:[%s233 + $0x150] sm:$0xff]
          %v338 = vld [vmem:[%s233 + $0x158] sm:$0xff]
          %v339 = vld [vmem:[%s233 + $0x160] sm:$0xff]
          %v340 = vld [vmem:[%s233 + $0x168] sm:$0xff]
          %v341 = vld [vmem:[%s233 + $0x170] sm:$0xff]
          %v342 = vld [vmem:[%s233 + $0x178] sm:$0xff]
          %v343 = vld [vmem:[%s233 + $0x180] sm:$0xff]
          %v344 = vld [vmem:[%s233 + $0x188] sm:$0xff]
          %v345 = vld [vmem:[%s233 + $0x190] sm:$0xff]
          %v346 = vld [vmem:[%s233 + $0x198] sm:$0xff]
          %v347 = vld [vmem:[%s233 + $0x1a0] sm:$0xff]
          %v348 = vld [vmem:[%s233 + $0x1a8] sm:$0xff]
          %v349 = vld [vmem:[%s233 + $0x1b0] sm:$0xff]
          %v350 = vld [vmem:[%s233 + $0x1b8] sm:$0xff]
          %v351 = vld [vmem:[%s233 + $0x1c0] sm:$0xff]
          %v352 = vld [vmem:[%s233 + $0x1c8] sm:$0xff]
          %v353 = vld [vmem:[%s233 + $0x1d0] sm:$0xff]
          %v354 = vld [vmem:[%s233 + $0x1d8] sm:$0xff]
          %v355 = vld [vmem:[%s233 + $0x1e0] sm:$0xff]
          %v356 = vld [vmem:[%s233 + $0x1e8] sm:$0xff]
          %v357 = vld [vmem:[%s233 + $0x1f0] sm:$0xff]
          %v358 = vld [vmem:[%s233 + $0x1f8] sm:$0xff]
          %v359 = vld [vmem:[%s271] sm:$0xf]
          %v361 = vlaneseq
          %v362 = vshrl.u32 %v361, 7
          %v363 = vsub.s32 0, %v362
          %v364 = vrot.slane %v359, %v363
          %v365 = vlaneseq
          %v366 = vshrl.u32 %v365, 7
          %v367 = vsub.s32 1, %v366
          %v368 = vrot.slane %v359, %v367
          %v369 = vlaneseq
          %v370 = vshrl.u32 %v369, 7
          %v371 = vsub.s32 2, %v370
          %v372 = vrot.slane %v359, %v371
          %v373 = vlaneseq
          %v374 = vshrl.u32 %v373, 7
          %v375 = vsub.s32 3, %v374
          %v376 = vrot.slane %v359, %v375
          %381 = vmatprep.subr.mxu0 %v356
          %382 = vmatpush1.msra.mxu0 %v355
          %383 = vmatprep.subr.mxu0 %v352
          %384 = vmatpush1.msra.mxu0 %v351
          %385 = vmatprep.subr.mxu0 %v348
          %386 = vmatpush1.msra.mxu0 %v347
          %387 = vmatprep.subr.mxu0 %v344
          %388 = vmatpush1.msra.mxu0 %v343
          %389 = vmatprep.subr.mxu0 %v340
          %390 = vmatpush1.msra.mxu0 %v339
          %391 = vmatprep.subr.mxu0 %v336
          %392 = vmatpush1.msra.mxu0 %v335
          %393 = vmatprep.subr.mxu0 %v332
          %394 = vmatpush1.msra.mxu0 %v331
          %395 = vmatprep.subr.mxu0 %v328
          %396 = vmatpush1.msra.mxu0 %v327
          %397 = vmatprep.subr.mxu0 %v324
          %398 = vmatpush1.msra.mxu0 %v323
          %399 = vmatprep.subr.mxu0 %v320
          %400 = vmatpush1.msra.mxu0 %v319
          %401 = vmatprep.subr.mxu0 %v316
          %402 = vmatpush1.msra.mxu0 %v315
          %403 = vmatprep.subr.mxu0 %v312
          %404 = vmatpush1.msra.mxu0 %v311
          %405 = vmatprep.subr.mxu0 %v308
          %406 = vmatpush1.msra.mxu0 %v307
          %407 = vmatprep.subr.mxu0 %v304
          %408 = vmatpush1.msra.mxu0 %v303
          %409 = vmatprep.subr.mxu0 %v300
          %410 = vmatpush1.msra.mxu0 %v299
          %411 = vmatprep.subr.mxu0 %v296
          %412 = vmatpush1.msra.mxu0 %v295
          %413 = vmatprep.subr.mxu0 0.0
          %414 = vmatpush2.msra.mxu0 0.0
          %415 = vmatprep.subr.mxu0 0.0
          %416 = vmatpush2.msra.mxu0 0.0
          %417 = vmatprep.subr.mxu0 0.0
          %418 = vmatpush2.msra.mxu0 0.0
          %419 = vmatprep.subr.mxu0 0.0
          %420 = vmatpush2.msra.mxu0 0.0
          %421 = vmatprep.subr.mxu0 0.0
          %422 = vmatpush2.msra.mxu0 0.0
          %423 = vmatprep.subr.mxu0 0.0
          %424 = vmatpush2.msra.mxu0 0.0
          %425 = vmatprep.subr.mxu0 0.0
          %426 = vmatpush2.msra.mxu0 0.0
          %427 = vmatprep.subr.mxu0 0.0
          %428 = vmatpush2.msra.mxu0 0.0
          %429 = vmatprep.subr.mxu0 0.0
          %430 = vmatpush2.msra.mxu0 0.0
          %431 = vmatprep.subr.mxu0 0.0
          %432 = vmatpush2.msra.mxu0 0.0
          %433 = vmatprep.subr.mxu0 0.0
          %434 = vmatpush2.msra.mxu0 0.0
          %435 = vmatprep.subr.mxu0 0.0
          %436 = vmatpush2.msra.mxu0 0.0
          %437 = vmatprep.subr.mxu0 0.0
          %438 = vmatpush2.msra.mxu0 0.0
          %439 = vmatprep.subr.mxu0 0.0
          %440 = vmatpush2.msra.mxu0 0.0
          %441 = vmatprep.subr.mxu0 0.0
          %442 = vmatpush2.msra.mxu0 0.0
          %443 = vmatprep.subr.mxu0 0.0
          %444 = vmatpush2.msra.mxu0 0.0
          %445 = vmatprep.mubr.f32.mxu0 0.0
          %446 = vmatmul.mubr.f32.gmra.mxu0 %v293
          %v447 = vpop.f32.mrf.mxu0
          %v448 = vadd.f32 %v364, %v447
          %v449 = vpop.f32.mrf.mxu0
          %v450 = vadd.f32 %v368, %v449
          %451 = vmatprep.mubr.f32.mxu0 0.0
          %452 = vmatmul.mubr.f32.gmra.mxu0 %v294
          %v453 = vpop.f32.mrf.mxu0
          %v454 = vadd.f32 %v364, %v453
          %v455 = vpop.f32.mrf.mxu0
          %v456 = vadd.f32 %v368, %v455
          %457 = vdwg.mxu0
          %458 = vmatprep.subr.mxu0 %v358
          %459 = vmatpush1.msra.mxu0 %v357
          %460 = vmatprep.subr.mxu0 %v354
          %461 = vmatpush1.msra.mxu0 %v353
          %462 = vmatprep.subr.mxu0 %v350
          %463 = vmatpush1.msra.mxu0 %v349
          %464 = vmatprep.subr.mxu0 %v346
          %465 = vmatpush1.msra.mxu0 %v345
          %466 = vmatprep.subr.mxu0 %v342
          %467 = vmatpush1.msra.mxu0 %v341
          %468 = vmatprep.subr.mxu0 %v338
          %469 = vmatpush1.msra.mxu0 %v337
          %470 = vmatprep.subr.mxu0 %v334
          %471 = vmatpush1.msra.mxu0 %v333
          %472 = vmatprep.subr.mxu0 %v330
          %473 = vmatpush1.msra.mxu0 %v329
          %474 = vmatprep.subr.mxu0 %v326
          %475 = vmatpush1.msra.mxu0 %v325
          %476 = vmatprep.subr.mxu0 %v322
          %477 = vmatpush1.msra.mxu0 %v321
          %478 = vmatprep.subr.mxu0 %v318
          %479 = vmatpush1.msra.mxu0 %v317
          %480 = vmatprep.subr.mxu0 %v314
          %481 = vmatpush1.msra.mxu0 %v313
          %482 = vmatprep.subr.mxu0 %v310
          %483 = vmatpush1.msra.mxu0 %v309
          %484 = vmatprep.subr.mxu0 %v306
          %485 = vmatpush1.msra.mxu0 %v305
          %486 = vmatprep.subr.mxu0 %v302
          %487 = vmatpush1.msra.mxu0 %v301
          %488 = vmatprep.subr.mxu0 %v298
          %489 = vmatpush1.msra.mxu0 %v297
          %490 = vmatprep.subr.mxu0 0.0
          %491 = vmatpush2.msra.mxu0 0.0
          %492 = vmatprep.subr.mxu0 0.0
          %493 = vmatpush2.msra.mxu0 0.0
          %494 = vmatprep.subr.mxu0 0.0
          %495 = vmatpush2.msra.mxu0 0.0
          %496 = vmatprep.subr.mxu0 0.0
          %497 = vmatpush2.msra.mxu0 0.0
          %498 = vmatprep.subr.mxu0 0.0
          %499 = vmatpush2.msra.mxu0 0.0
          %500 = vmatprep.subr.mxu0 0.0
          %501 = vmatpush2.msra.mxu0 0.0
          %502 = vmatprep.subr.mxu0 0.0
          %503 = vmatpush2.msra.mxu0 0.0
          %504 = vmatprep.subr.mxu0 0.0
          %505 = vmatpush2.msra.mxu0 0.0
          %506 = vmatprep.subr.mxu0 0.0
          %507 = vmatpush2.msra.mxu0 0.0
          %508 = vmatprep.subr.mxu0 0.0
          %509 = vmatpush2.msra.mxu0 0.0
          %510 = vmatprep.subr.mxu0 0.0
          %511 = vmatpush2.msra.mxu0 0.0
          %512 = vmatprep.subr.mxu0 0.0
          %513 = vmatpush2.msra.mxu0 0.0
          %514 = vmatprep.subr.mxu0 0.0
          %515 = vmatpush2.msra.mxu0 0.0
          %516 = vmatprep.subr.mxu0 0.0
          %517 = vmatpush2.msra.mxu0 0.0
          %518 = vmatprep.subr.mxu0 0.0
          %519 = vmatpush2.msra.mxu0 0.0
          %520 = vmatprep.subr.mxu0 0.0
          %521 = vmatpush2.msra.mxu0 0.0
          %522 = vmatprep.mubr.f32.mxu0 0.0
          %523 = vmatmul.mubr.f32.gmra.mxu0 %v293
          %v524 = vpop.f32.mrf.mxu0
          %v525 = vadd.f32 %v372, %v524
          %v526 = vpop.f32.mrf.mxu0
          %v527 = vadd.f32 %v376, %v526
          %528 = vmatprep.mubr.f32.mxu0 0.0
          %529 = vmatmul.mubr.f32.gmra.mxu0 %v294
          %v530 = vpop.f32.mrf.mxu0
          %v531 = vadd.f32 %v372, %v530
          %v532 = vpop.f32.mrf.mxu0
          %v533 = vadd.f32 %v376, %v532
          %534 = vdwg.mxu0
          %s535 = smul.u32 %s26, 8
          %s536 = smul.addr %s535, 8
          %s537 = scalar_lea.vmem [#allocation2], %s536
          %538 = vst [vmem:[%s537] sm:$0xff] %v448
          %539 = vst [vmem:[%s537 + $0x8] sm:$0xff] %v450
          %540 = vst [vmem:[%s537 + $0x10] sm:$0xff] %v525
          %541 = vst [vmem:[%s537 + $0x18] sm:$0xff] %v527
          %542 = vst [vmem:[%s537 + $0x20] sm:$0xff] %v454
          %543 = vst [vmem:[%s537 + $0x28] sm:$0xff] %v456
          %544 = vst [vmem:[%s537 + $0x30] sm:$0xff] %v531
          %545 = vst [vmem:[%s537 + $0x38] sm:$0xff] %v533
          %v546 = vld [vmem:[#allocation3] sm:$0xff]
          %v547 = vld [vmem:[#allocation3 + $0x8] sm:$0xff]
          %v548 = vmax.f32 %v448, %v525
          %v549 = vmax.f32 %v450, %v527
          %v550 = vmax.f32 %v548, %v549
          %551 = vmax.xlane.f32.xlu0 %v550
          %v552 = vpop.xlane.xlu0 %551
          %v553 = vmax.f32 %v454, %v531
          %v554 = vmax.f32 %v456, %v533
          %v555 = vmax.f32 %v553, %v554
          %556 = vmax.xlane.f32.xlu0 %v555
          %v557 = vpop.xlane.xlu0 %556
          %v558 = vmax.f32 %v546, %v552
          %v559 = vmax.f32 %v547, %v557
          %v560 = vld [vmem:[#allocation4] sm:$0xff]
          %v561 = vld [vmem:[#allocation4 + $0x8] sm:$0xff]
          %v562 = vsub.f32 %v546, %v558
          %v563 = vsub.f32 %v547, %v559
          %v564 = vmul.f32 %v562, 1.442695
          %v565 = vpow.pop %v564
          %v566 = vmul.f32 %v563, 1.442695
          %v567 = vpow.pop %v566
          %v568 = vmul.f32 %v560, %v565
          %v569 = vmul.f32 %v561, %v567
          %571 = vset.pattern.permute.xlu0 0
          %572 = vperm.xlu0 %571, %v558
          %v573 = vpop.permute.xlu0 %572
          %576 = vset.pattern.permute.xlu0 0
          %577 = vperm.xlu0 %576, %v559
          %v578 = vpop.permute.xlu0 %577
          %v580 = vsub.f32 %v448, %v573
          %v581 = vsub.f32 %v450, %v573
          %v582 = vsub.f32 %v525, %v573
          %v583 = vsub.f32 %v527, %v573
          %v584 = vsub.f32 %v454, %v578
          %v585 = vsub.f32 %v456, %v578
          %v586 = vsub.f32 %v531, %v578
          %v587 = vsub.f32 %v533, %v578
          %v588 = vmul.f32 %v580, 1.442695
          %v589 = vpow.pop %v588
          %v590 = vmul.f32 %v581, 1.442695
          %v591 = vpow.pop %v590
          %v592 = vmul.f32 %v582, 1.442695
          %v593 = vpow.pop %v592
          %v594 = vmul.f32 %v583, 1.442695
          %v595 = vpow.pop %v594
          %v596 = vmul.f32 %v584, 1.442695
          %v597 = vpow.pop %v596
          %v598 = vmul.f32 %v585, 1.442695
          %v599 = vpow.pop %v598
          %v600 = vmul.f32 %v586, 1.442695
          %v601 = vpow.pop %v600
          %v602 = vmul.f32 %v587, 1.442695
          %v603 = vpow.pop %v602
          %v604 = vadd.f32 %v589, %v591
          %v605 = vadd.f32 %v604, %v593
          %v606 = vadd.f32 %v605, %v595
          %607 = vadd.xlane.f32.xlu0 %v606
          %v608 = vpop.xlane.xlu0 %607
          %v609 = vadd.f32 %v597, %v599
          %v610 = vadd.f32 %v609, %v601
          %v611 = vadd.f32 %v610, %v603
          %612 = vadd.xlane.f32.xlu0 %v611
          %v613 = vpop.xlane.xlu0 %612
          %v614 = vadd.f32 %v568, %v608
          %v615 = vadd.f32 %v569, %v613
          %vm616 = vcmask 7168
          %617 = vst.msk [vmem:[#allocation4] sm:$0xff] %vm616, %v614
          %618 = vst.msk [vmem:[#allocation4 + $0x8] sm:$0xff] %vm616, %v615
          %619 = vst.msk [vmem:[#allocation3] sm:$0xff] %vm616, %v558
          %620 = vst.msk [vmem:[#allocation3 + $0x8] sm:$0xff] %vm616, %v559
        $region48: #{masked_lm_head_prepared.1} parent=31 // pred_fallthru
          _
        // Predicated region
        $region49: #{masked_lm_head_prepared.1} parent=31 // pred_check
          %p621 = pneg %p280
        $region50: #{masked_lm_head_prepared.1} parent=31 // pred_check_branch
          %623 = sbr.rel (%p621) target = $region52
        $region51: #{masked_lm_head_prepared.1} parent=31 // pred_region
          %v624 = vld [vmem:[#allocation3] sm:$0xff]
          %v625 = vld [vmem:[#allocation3 + $0x8] sm:$0xff]
          %v626 = vld [vmem:[#allocation4] sm:$0xff]
          %v627 = vld [vmem:[#allocation4 + $0x8] sm:$0xff]
          %v628 = vlog2.pop %v626
          %v629 = vmul.f32 %v628, 0.6931472
          %v630 = vlog2.pop %v627
          %v631 = vmul.f32 %v630, 0.6931472
          %v632 = vadd.f32 %v624, %v629
          %v633 = vadd.f32 %v625, %v631
          %vm634 = vcmask 7168
          %635 = vst.msk [vmem:[#allocation5] sm:$0xff] %vm634, %v632
          %636 = vst.msk [vmem:[#allocation5 + $0x8] sm:$0xff] %vm634, %v633
        $region52: #{masked_lm_head_prepared.1} parent=31 // pred_fallthru
          _
        %p637 = scmp.ge.s32.totalorder %s26, 1
        // Predicated region
        $region53: #{masked_lm_head_prepared.1} parent=31 // pred_check
          %p638 = pneg %p637
        $region54: #{masked_lm_head_prepared.1} parent=31 // pred_check_branch
          %640 = sbr.rel (%p638) target = $region56
        $region55: #{masked_lm_head_prepared.1} parent=31 // pred_region
          %s641 = ssub.s32 %s26, 1
          %v642 = vld [vmem:[#allocation5] sm:$0xff]
          %v643 = vld [vmem:[#allocation5 + $0x8] sm:$0xff]
          %s644 = smul.u32 %s641, 8
          %s645 = smul.addr %s644, 8
          %s646 = scalar_lea.vmem [#allocation2], %s645
          %v647 = vld [vmem:[%s646] sm:$0xff]
          %v648 = vld [vmem:[%s646 + $0x8] sm:$0xff]
          %v649 = vld [vmem:[%s646 + $0x10] sm:$0xff]
          %v650 = vld [vmem:[%s646 + $0x18] sm:$0xff]
          %v651 = vld [vmem:[%s646 + $0x20] sm:$0xff]
          %v652 = vld [vmem:[%s646 + $0x28] sm:$0xff]
          %v653 = vld [vmem:[%s646 + $0x30] sm:$0xff]
          %v654 = vld [vmem:[%s646 + $0x38] sm:$0xff]
          %656 = vset.pattern.permute.xlu0 0
          %657 = vperm.xlu0 %656, %v642
          %v658 = vpop.permute.xlu0 %657
          %661 = vset.pattern.permute.xlu0 0
          %662 = vperm.xlu0 %661, %v643
          %v663 = vpop.permute.xlu0 %662
          %v665 = vsub.f32 %v647, %v658
          %v666 = vsub.f32 %v648, %v658
          %v667 = vsub.f32 %v649, %v658
          %v668 = vsub.f32 %v650, %v658
          %v669 = vsub.f32 %v651, %v663
          %v670 = vsub.f32 %v652, %v663
          %v671 = vsub.f32 %v653, %v663
          %v672 = vsub.f32 %v654, %v663
          %673 = vst [vmem:[%s261] sm:$0xff] %v665
          %674 = vst [vmem:[%s261 + $0x8] sm:$0xff] %v666
          %675 = vst [vmem:[%s261 + $0x10] sm:$0xff] %v667
          %676 = vst [vmem:[%s261 + $0x18] sm:$0xff] %v668
          %677 = vst [vmem:[%s261 + $0x20] sm:$0xff] %v669
          %678 = vst [vmem:[%s261 + $0x28] sm:$0xff] %v670
          %679 = vst [vmem:[%s261 + $0x30] sm:$0xff] %v671
          %680 = vst [vmem:[%s261 + $0x38] sm:$0xff] %v672
        $region56: #{masked_lm_head_prepared.1} parent=31 // pred_fallthru
          _
        %s681 = sand.u32 %s135, 1
        %s682 = scalar_lea.sflag [#allocation8], %s681
        %s683 = sand.u32 %s135, 1
        %s684 = smul.addr %s683, 64
        %s685 = scalar_lea.vmem [#allocation11], %s684
        // Predicated region
        $region57: #{masked_lm_head_prepared.1} parent=31 // pred_check
          %p686 = pneg %p145
        $region58: #{masked_lm_head_prepared.1} parent=31 // pred_check_branch
          %688 = sbr.rel (%p686) target = $region60
        $region59: #{masked_lm_head_prepared.1} parent=31 // pred_region
          %s689 = ssub.s32 %s26, 1
          %p690 = scmp.gt.s32.totalorder %s689, 0
          %s691 = scalar_select %p690, %s689, 0
          %s692 = smul.u32 2, %s25
          %s693 = smul.u32 4, %s691
          %s695 = ssub.s32 1024, 1024
          %696 = vsyncadd %s682, %s695
          %s697 = smul.addr %s692, 4
          %s698 = sadd.s32 %s693, %s697
          %s699 = smul.addr %s698, 128
          %s700 = scalar_lea.hbm %s3, %s699
          %s701 = sshll.u32 %s685, 4
          %s702 = int_to_ptr.vmem [resolvable:$true] %s701
          %707 = dma.vmem_to_hbm [thread:$0]  %s702, 1024, %s700, %s682, 512, 512, 32
        $region60: #{masked_lm_head_prepared.1} parent=31 // pred_fallthru
          _
      $region32: #{masked_lm_head_prepared.1} parent=5 // pred_fallthru
        _
      %p708 = scmp.le.s32.totalorder 2, %s16
      // Predicated region
      $region61: #{masked_lm_head_prepared.1} parent=5 // pred_check
        %p709 = pneg %p708
      $region62: #{masked_lm_head_prepared.1} parent=5 // pred_check_branch
        %711 = sbr.rel (%p709) target = $region64
      $region63: #{masked_lm_head_prepared.1} parent=5 // pred_region
        %s712 = ssub.s32 %s16, 2
        // Predicated region
        $region65: #{masked_lm_head_prepared.1} parent=63 // pred_check
          %p713 = pneg %p151
        $region66: #{masked_lm_head_prepared.1} parent=63 // pred_check_branch
          %715 = sbr.rel (%p713) target = $region68
        $region67: #{masked_lm_head_prepared.1} parent=63 // pred_region
          %s716 = sand.u32 %s136, 1
          %s717 = scalar_lea.sflag [#allocation8], %s716
          %s718 = sand.u32 %s136, 1
          %s719 = smul.addr %s718, 64
          %s720 = scalar_lea.vmem [#allocation11], %s719
          %721 = dma.done %s717, 1024
        $region68: #{masked_lm_head_prepared.1} parent=63 // pred_fallthru
          _
      $region64: #{masked_lm_head_prepared.1} parent=5 // pred_fallthru
        _
    $region6: #{masked_lm_head_prepared.1} parent=1 // loop_footer
      %s20 = sadd.s32 1, %s16
    $region7: #{masked_lm_head_prepared.1} parent=1 // loop_footer_branch
      %15 = sbr.rel target = $region3
    $region8: #{masked_lm_head_prepared.1} parent=1 // loop_exit
      _
    %722 = vsyncpa [#allocation7], 1
    %s723 = scalar_lea.sflag [#allocation7], 1
    %724 = vsyncpa %s723, 1
    %725 = vsyncpa [#allocation10], 1
    %s726 = scalar_lea.sflag [#allocation10], 1
    %727 = vsyncpa %s726, 1
    %728 = vsyncpa [#allocation8], 1
    %s729 = scalar_lea.sflag [#allocation8], 1
    %730 = vsyncpa %s729, 1

</llo_original>
